<compile_context>
chip_gen: v6e
topology: v6e:2x2x1
jax: 0.10.0
libtpu: 0.0.40
codegen_flags: <defaults>
</compile_context>

<pallas_src>
import functools

import jax
import jax.numpy as jnp
from jax.experimental import pallas as pl
from jax.experimental.pallas import tpu as pltpu

LANES = 128
MAX_TILE_ROWS = 2048          # 2048 * 128 * 4B = 1 MiB per f32 input tile
_PAD_LOGIT = -1.0e4           # sigmoid(_PAD_LOGIT) underflows -> pad loss == 0 exactly


def _bce_kernel(x_ref, t_ref, o_ref, acc_ref, *, total_elems):
    i = pl.program_id(0)

    @pl.when(i == 0)
    def _init():
        acc_ref[...] = jnp.zeros_like(acc_ref)

    x = x_ref[...].astype(jnp.float32)
    t = t_ref[...].astype(jnp.float32)

    # p = sigmoid(x):  log p     = -softplus(-x)
    #                  log (1-p) = log p - x        (softplus(x) = x + softplus(-x))
    # PyTorch's BCELoss clamps each log term at -100 — mirror that.
    log_p_raw = -jax.nn.softplus(-x)
    log_p = jnp.maximum(log_p_raw, jnp.float32(-100.0))
    log_1mp = jnp.maximum(log_p_raw - x, jnp.float32(-100.0))
    acc_ref[...] += -(t * log_p + (1.0 - t) * log_1mp)

    @pl.when(i == pl.num_programs(0) - 1)
    def _finalize():
        o_ref[0, 0] = jnp.sum(acc_ref[...]) / jnp.float32(total_elems)


def bce_loss_2d(logits, targets):
    """Equivalent of BCELoss2d.forward: mean BCE over sigmoid(logits) vs targets."""
    assert logits.shape == targets.shape
    total = int(logits.size)

    x = logits.reshape(-1)          # keep native dtype; kernel casts to f32
    t = targets.reshape(-1)

    # Tile sizing: rows of 128 lanes, sublane-aligned (multiple of 8), capped at
    # MAX_TILE_ROWS; row count padded to a multiple of the tile so every grid
    # block is fully in-bounds (no in-kernel masking needed).
    rows_needed = pl.cdiv(total, LANES)
    rows8 = pl.cdiv(rows_needed, 8) * 8
    tile_rows = min(MAX_TILE_ROWS, rows8)
    rows = pl.cdiv(rows8, tile_rows) * tile_rows
    padded = rows * LANES
    pad = padded - total
    if pad:
        # Pad logits very negative and targets with 0 so padded elements
        # contribute exactly 0 to the loss sum (verified: log p clamps to -100
        # but is multiplied by t=0; log(1-p) term is exactly 0).
        x = jnp.pad(x, (0, pad), constant_values=_PAD_LOGIT)
        t = jnp.pad(t, (0, pad), constant_values=0)

    x2 = x.reshape(rows, LANES)
    t2 = t.reshape(rows, LANES)

    kernel = functools.partial(_bce_kernel, total_elems=total)

    out = pl.pallas_call(
        kernel,
        out_shape=jax.ShapeDtypeStruct((1, 1), jnp.float32),
        grid_spec=pltpu.PrefetchScalarGridSpec(
            num_scalar_prefetch=0,
            grid=(rows // tile_rows,),
            in_specs=[
                pl.BlockSpec((tile_rows, LANES), lambda i: (i, 0)),
                pl.BlockSpec((tile_rows, LANES), lambda i: (i, 0)),
            ],
            out_specs=pl.BlockSpec(memory_space=pltpu.SMEM),
            scratch_shapes=[pltpu.VMEM((tile_rows, LANES), jnp.float32)],
        ),
        compiler_params=pltpu.CompilerParams(
            dimension_semantics=("arbitrary",),
            # 2 inputs x 2 double-buffers x <=1 MiB + 1 MiB accumulator; 32 MiB
            # gives headroom and is within the scoped limit on every generation.
            vmem_limit_bytes=32 * 1024 * 1024,
        ),
    )(x2, t2)
    return out[0, 0]


if __name__ == "__main__":
    key = jax.random.PRNGKey(0)
    k1, k2 = jax.random.split(key)

    # Small shapes consistent with a segmentation loss: NCHW.
    N, C, H, W = 2, 4, 16, 16
    logits = jax.random.normal(k1, (N, C, H, W), dtype=jnp.float32) * 3.0
    targets = (jax.random.uniform(k2, (N, C, H, W)) > 0.5).astype(jnp.float32)

    loss = jax.block_until_ready(bce_loss_2d(logits, targets))

    # Reference check in plain JAX (same math as torch.nn.BCELoss(sigmoid(x), t)).
    p = jax.nn.sigmoid(logits.reshape(-1))
    t = targets.reshape(-1)
    ref = jnp.mean(
        -(t * jnp.maximum(jnp.log(p), -100.0)
          + (1.0 - t) * jnp.maximum(jnp.log1p(-p), -100.0))
    )
    assert jnp.allclose(loss, ref, atol=1e-5, rtol=1e-5), (loss, ref)

    print("KERNEL_OK")
</pallas_src>

<mosaic_0001>
module attributes {stable_mosaic.version = 11 : i64} {
  func.func @_bce_kernel(%arg0: i32, %arg1: memref<16x128xf32, #tpu.memory_space<vmem>>, %arg2: memref<16x128xf32, #tpu.memory_space<vmem>>, %arg3: memref<1x1xf32, #tpu.memory_space<smem>>, %arg4: memref<16x128xf32, #tpu.memory_space<vmem>>) attributes {dimension_semantics = [#tpu.dimension_semantics<arbitrary>], iteration_bounds = array<i64: 1>, scalar_prefetch = 0 : i64, scratch_operands = 1 : i64, tpu.core_type = #tpu.core_type<tc>, window_params = [{transform_indices = @transform_0, window_bounds = array<i64: 16, 128>}, {transform_indices = @transform_1, window_bounds = array<i64: 16, 128>}, {transform_indices = @transform_2, window_bounds = array<i64: 1, 1>}]} {
    %c0_i32 = arith.constant 0 : i32
    %0 = arith.cmpi eq, %arg0, %c0_i32 : i32
    %1 = arith.extui %0 : i1 to i32
    %c0_i32_0 = arith.constant 0 : i32
    %2 = arith.cmpi ne, %1, %c0_i32_0 : i32
    scf.if %2 {
      %cst_17 = arith.constant 0.000000e+00 : f32
      %41 = vector.broadcast %cst_17 : f32 to vector<16x128xf32>
      %c0_18 = arith.constant 0 : index
      %c0_19 = arith.constant 0 : index
      %42 = vector.load %arg4[%c0_18, %c0_19] : memref<16x128xf32, #tpu.memory_space<vmem>>, vector<16x128xf32>
      tpu.vector_store %arg4[%c0_18, %c0_19], %41 {strides = array<i32>} : memref<16x128xf32, #tpu.memory_space<vmem>>, vector<16x128xf32>,
    } else {
    }
    %c0 = arith.constant 0 : index
    %c0_1 = arith.constant 0 : index
    %3 = vector.load %arg1[%c0, %c0_1] : memref<16x128xf32, #tpu.memory_space<vmem>>, vector<16x128xf32>
    %c0_2 = arith.constant 0 : index
    %c0_3 = arith.constant 0 : index
    %4 = vector.load %arg2[%c0_2, %c0_3] : memref<16x128xf32, #tpu.memory_space<vmem>>, vector<16x128xf32>
    %cst = arith.constant 0.000000e+00 : f32
    %5 = vector.broadcast %cst : f32 to vector<16x128xf32>
    %6 = arith.subf %5, %3 : vector<16x128xf32>
    %cst_4 = arith.constant 0.000000e+00 : f32
    %7 = vector.broadcast %cst_4 : f32 to vector<16x128xf32>
    %8 = arith.maximumf %6, %7 : vector<16x128xf32>
    %9 = vector.broadcast %cst_4 : f32 to vector<16x128xf32>
    %10 = arith.subf %6, %9 : vector<16x128xf32>
    %11 = arith.cmpf one, %10, %10 : vector<16x128xf32>
    %12 = vector.broadcast %cst_4 : f32 to vector<16x128xf32>
    %13 = arith.addf %6, %12 : vector<16x128xf32>
    %14 = math.absf %10 : vector<16x128xf32>
    %cst_5 = arith.constant 0.000000e+00 : f32
    %15 = vector.broadcast %cst_5 : f32 to vector<16x128xf32>
    %16 = arith.subf %15, %14 : vector<16x128xf32>
    %17 = math.exp %16 : vector<16x128xf32>
    %18 = math.log1p %17 : vector<16x128xf32>
    %19 = arith.addf %8, %18 : vector<16x128xf32>
    %20 = arith.select %11, %13, %19 : vector<16x128xi1>, vector<16x128xf32>
    %cst_6 = arith.constant 0.000000e+00 : f32
    %21 = vector.broadcast %cst_6 : f32 to vector<16x128xf32>
    %22 = arith.subf %21, %20 : vector<16x128xf32>
    %cst_7 = arith.constant -1.000000e+02 : f32
    %23 = vector.broadcast %cst_7 : f32 to vector<16x128xf32>
    %24 = arith.maximumf %22, %23 : vector<16x128xf32>
    %25 = arith.subf %22, %3 : vector<16x128xf32>
    %cst_8 = arith.constant -1.000000e+02 : f32
    %26 = vector.broadcast %cst_8 : f32 to vector<16x128xf32>
    %27 = arith.maximumf %25, %26 : vector<16x128xf32>
    %c0_9 = arith.constant 0 : index
    %c0_10 = arith.constant 0 : index
    %28 = vector.load %arg4[%c0_9, %c0_10] : memref<16x128xf32, #tpu.memory_space<vmem>>, vector<16x128xf32>
    %29 = arith.mulf %4, %24 : vector<16x128xf32>
    %cst_11 = arith.constant 1.000000e+00 : f32
    %30 = vector.broadcast %cst_11 : f32 to vector<16x128xf32>
    %31 = arith.subf %30, %4 : vector<16x128xf32>
    %32 = arith.mulf %31, %27 : vector<16x128xf32>
    %33 = arith.addf %29, %32 : vector<16x128xf32>
    %cst_12 = arith.constant 0.000000e+00 : f32
    %34 = vector.broadcast %cst_12 : f32 to vector<16x128xf32>
    %35 = arith.subf %34, %33 : vector<16x128xf32>
    %36 = arith.addf %28, %35 : vector<16x128xf32>
    %c0_13 = arith.constant 0 : index
    %c0_14 = arith.constant 0 : index
    %37 = vector.load %arg4[%c0_13, %c0_14] : memref<16x128xf32, #tpu.memory_space<vmem>>, vector<16x128xf32>
    tpu.vector_store %arg4[%c0_13, %c0_14], %36 {strides = array<i32>} : memref<16x128xf32, #tpu.memory_space<vmem>>, vector<16x128xf32>,
    %c0_i32_15 = arith.constant 0 : i32
    %38 = arith.cmpi eq, %arg0, %c0_i32_15 : i32
    %39 = arith.extui %38 : i1 to i32
    %c0_i32_16 = arith.constant 0 : i32
    %40 = arith.cmpi ne, %39, %c0_i32_16 : i32
    scf.if %40 {
      %c0_17 = arith.constant 0 : index
      %c0_18 = arith.constant 0 : index
      %41 = vector.load %arg4[%c0_17, %c0_18] : memref<16x128xf32, #tpu.memory_space<vmem>>, vector<16x128xf32>
      %42 = vector.shape_cast %41 : vector<16x128xf32> to vector<1x16x128xf32>
      %cst_19 = arith.constant dense<0.000000e+00> : vector<1xf32>
      %43 = vector.multi_reduction <add>, %42, %cst_19 [1, 2] : vector<1x16x128xf32> to vector<1xf32>
      %44 = vector.shape_cast %43 : vector<1xf32> to vector<1x1x1xf32>
      %45 = vector.extract %44[0, 0, 0] : f32 from vector<1x1x1xf32>
      %cst_20 = arith.constant 2.048000e+03 : f32
      %46 = arith.divf %45, %cst_20 : f32
      %c0_21 = arith.constant 0 : index
      %c0_22 = arith.constant 0 : index
      %47 = memref.load %arg3[%c0_21, %c0_22] : memref<1x1xf32, #tpu.memory_space<smem>>
      memref.store %46, %arg3[%c0_21, %c0_22] : memref<1x1xf32, #tpu.memory_space<smem>>
    } else {
    }
    return
  }
  func.func @transform_0(%arg0: i32) -> (i32, i32) {
    %c0_i32 = arith.constant 0 : i32
    %c0_i32_0 = arith.constant 0 : i32
    return %arg0, %c0_i32 : i32, i32
  }
  func.func @transform_1(%arg0: i32) -> (i32, i32) {
    %c0_i32 = arith.constant 0 : i32
    %c0_i32_0 = arith.constant 0 : i32
    return %arg0, %c0_i32 : i32, i32
  }
  func.func @transform_2(%arg0: i32) -> (i32, i32) {
    %c0_i32 = arith.constant 0 : i32
    %c0_i32_0 = arith.constant 0 : i32
    %c0_i32_1 = arith.constant 0 : i32
    return %c0_i32, %c0_i32_0 : i32, i32
  }
}

</mosaic_0001>

<llo_original>
// kernel: tpu_custom_call.1
$region0: #{tpu_custom_call.1}
  #allocation0 [shape = 'u32[]', space=smem, size = 0x4, offset = 0x4, fixed_abs, tag = 'smem constant byte address 0x4 - core index']
  #allocation1 [shape = 'u32[144,128]{1,0:T(1,128)}', space=vmem, size = 0x12000, scoped, tag = 'internal scratch']
  #allocation2 [shape = 'f32[16,128]{1,0:T(8,128)}', space=vmem, size = 0x2000, scoped, tag = 'scratch operand']
  %s0 = inlined_call_operand.hbm [shape: f32[16,128], index: 0, kind: input, shape index: {}]
  %s1 = inlined_call_operand.hbm [shape: f32[16,128], index: 1, kind: input, shape index: {}]
  %s2 = inlined_call_operand.hbm [shape: f32[1,1], index: 2, kind: output, shape index: {}]
  %s3 = sld [smem:[#allocation0]]
  $region34: #{tpu_custom_call.1} parent=0
    _
  %s5 = ssub.s32 1, %s3
  %s6 = scalar_select 0, %s5, %s3
  $region1: #{tpu_custom_call.1} parent=0
    #allocation3 [shape = 'u8[8192]{0}', space=vmem, size = 0x2000, scoped, tag = 'input window, operand 0, single buffered']
    #allocation4 [shape = 's32[1]{0}', space=sflag, size = 0x4, scoped, tag = 'scoped memory for tpu_custom_call.1']
    #allocation5 [shape = 's32[1]{0}', space=sflag, size = 0x4, scoped, tag = 'scoped memory for tpu_custom_call.1']
    #allocation6 [shape = 'u8[8192]{0}', space=vmem, size = 0x2000, scoped, tag = 'input window, operand 1, single buffered']
    #allocation7 [shape = 's32[1]{0}', space=sflag, size = 0x4, scoped, tag = 'scoped memory for tpu_custom_call.1']
    #allocation8 [shape = 'u8[512]{0}', space=smem, size = 0x200, scoped, tag = 'output window, operand 0, single buffered']
    %7 = vsyncpa [#allocation4], 0
    %8 = vsyncpa [#allocation7], 0
    %9 = vsyncpa [#allocation5], 0
    // Predicated region
    $region2: #{tpu_custom_call.1} parent=1 // pred_check
      _
    $region3: #{tpu_custom_call.1} parent=1 // pred_check_branch
      %11 = sbr.rel (0) target = $region5
    $region4: #{tpu_custom_call.1} parent=1 // pred_region
      %s13 = ssub.s32 256, 256
      %14 = vsyncadd [#allocation4], %s13
      %s15 = sshll.u32 [#allocation3], 4
      %s16 = int_to_ptr.vmem [resolvable:$true] %s15
      %21 = dma.hbm_to_vmem [thread:$0]  %s0, 256, %s16, [#allocation4], 128, 128, 8
    $region5: #{tpu_custom_call.1} parent=1 // pred_fallthru
      _
    // Predicated region
    $region6: #{tpu_custom_call.1} parent=1 // pred_check
      _
    $region7: #{tpu_custom_call.1} parent=1 // pred_check_branch
      %23 = sbr.rel (0) target = $region9
    $region8: #{tpu_custom_call.1} parent=1 // pred_region
      %s25 = ssub.s32 256, 256
      %26 = vsyncadd [#allocation7], %s25
      %s27 = sshll.u32 [#allocation6], 4
      %s28 = int_to_ptr.vmem [resolvable:$true] %s27
      %33 = dma.hbm_to_vmem [thread:$0]  %s1, 256, %s28, [#allocation7], 128, 128, 8
    $region9: #{tpu_custom_call.1} parent=1 // pred_fallthru
      _
    // Predicated region
    $region10: #{tpu_custom_call.1} parent=1 // pred_check
      _
    $region11: #{tpu_custom_call.1} parent=1 // pred_check_branch
      %35 = sbr.rel (0) target = $region13
    $region12: #{tpu_custom_call.1} parent=1 // pred_region
      %36 = dma.done [#allocation4], 256
    $region13: #{tpu_custom_call.1} parent=1 // pred_fallthru
      _
    // Predicated region
    $region14: #{tpu_custom_call.1} parent=1 // pred_check
      _
    $region15: #{tpu_custom_call.1} parent=1 // pred_check_branch
      %38 = sbr.rel (0) target = $region17
    $region16: #{tpu_custom_call.1} parent=1 // pred_region
      %39 = dma.done [#allocation7], 256
    $region17: #{tpu_custom_call.1} parent=1 // pred_fallthru
      _
    %p40 = scmp.eq.s32.totalorder 0, 0
    // Predicated region
    $region18: #{tpu_custom_call.1} parent=1 // pred_check
      %p41 = pneg %p40
    $region19: #{tpu_custom_call.1} parent=1 // pred_check_branch
      %43 = sbr.rel (%p41) target = $region21
    $region20: #{tpu_custom_call.1} parent=1 // pred_region
      %44 = vst [vmem:[#allocation2] sm:$0xff] 0.0
      %45 = vst [vmem:[#allocation2 + $0x8] sm:$0xff] 0.0
    $region21: #{tpu_custom_call.1} parent=1 // pred_fallthru
      _
    %v46 = vld [vmem:[#allocation3] sm:$0xff]
    %v47 = vld [vmem:[#allocation3 + $0x8] sm:$0xff]
    %v48 = vld [vmem:[#allocation6] sm:$0xff]
    %v49 = vld [vmem:[#allocation6 + $0x8] sm:$0xff]
    %v50 = vsub.f32 0.0, %v46
    %v51 = vsub.f32 0.0, %v47
    %v52 = vmax.f32 %v50, 0.0
    %v53 = vmax.f32 %v51, 0.0
    %vm54 = vcmp.ne.f32.partialorder %v50, %v50
    %vm55 = vcmp.ne.f32.partialorder %v51, %v51
    %v56 = vadd.f32 %v50, 0.0
    %v57 = vadd.f32 %v51, 0.0
    %v58 = vand.u32 2147483647, %v50
    %v59 = vand.u32 2147483647, %v51
    %v60 = vsub.f32 0.0, %v58
    %v61 = vsub.f32 0.0, %v59
    %v62 = vmul.f32 %v60, 1.442695
    %v63 = vpow.pop %v62
    %v64 = vmul.f32 %v61, 1.442695
    %v65 = vpow.pop %v64
    %v66 = vadd.f32 %v63, 1.0
    %v67 = vlog2.pop %v66
    %v68 = vmul.f32 %v67, 0.6931472
    %v69 = vmul.f32 -0.5, %v63
    %v70 = vadd.f32 %v69, 1.0
    %v71 = vmul.f32 %v70, %v63
    %v72 = vand.u32 2147483647, %v63
    %vm73 = vcmp.lt.f32.partialorder %v72, 0.0004427343
    %v74 = vsel %vm73, %v71, %v68
    %v75 = vadd.f32 %v65, 1.0
    %v76 = vlog2.pop %v75
    %v77 = vmul.f32 %v76, 0.6931472
    %v78 = vmul.f32 -0.5, %v65
    %v79 = vadd.f32 %v78, 1.0
    %v80 = vmul.f32 %v79, %v65
    %v81 = vand.u32 2147483647, %v65
    %vm82 = vcmp.lt.f32.partialorder %v81, 0.0004427343
    %v83 = vsel %vm82, %v80, %v77
    %v84 = vadd.f32 %v52, %v74
    %v85 = vadd.f32 %v53, %v83
    %v86 = vsel %vm54, %v56, %v84
    %v87 = vsel %vm55, %v57, %v85
    %v88 = vsub.f32 0.0, %v86
    %v89 = vsub.f32 0.0, %v87
    %v90 = vmax.f32 %v88, -100.0
    %v91 = vmax.f32 %v89, -100.0
    %v92 = vsub.f32 %v88, %v46
    %v93 = vsub.f32 %v89, %v47
    %v94 = vmax.f32 %v92, -100.0
    %v95 = vmax.f32 %v93, -100.0
    %v96 = vld [vmem:[#allocation2] sm:$0xff]
    %v97 = vld [vmem:[#allocation2 + $0x8] sm:$0xff]
    %v98 = vmul.f32 %v48, %v90
    %v99 = vmul.f32 %v49, %v91
    %v100 = vsub.f32 1.0, %v48
    %v101 = vsub.f32 1.0, %v49
    %v102 = vmul.f32 %v100, %v94
    %v103 = vmul.f32 %v101, %v95
    %v104 = vadd.f32 %v98, %v102
    %v105 = vadd.f32 %v99, %v103
    %v106 = vsub.f32 0.0, %v104
    %v107 = vsub.f32 0.0, %v105
    %v108 = vadd.f32 %v96, %v106
    %v109 = vadd.f32 %v97, %v107
    %110 = vst [vmem:[#allocation2] sm:$0xff] %v108
    %111 = vst [vmem:[#allocation2 + $0x8] sm:$0xff] %v109
    // Predicated region
    $region22: #{tpu_custom_call.1} parent=1 // pred_check
      %p112 = pneg %p40
    $region23: #{tpu_custom_call.1} parent=1 // pred_check_branch
      %114 = sbr.rel (%p112) target = $region25
    $region24: #{tpu_custom_call.1} parent=1 // pred_region
      %v115 = vld [vmem:[#allocation2] sm:$0xff]
      %v116 = vld [vmem:[#allocation2 + $0x8] sm:$0xff]
      %v117 = vadd.f32 %v115, %v116
      %118 = vadd.xlane.f32.xlu0 %v117
      %v119 = vpop.xlane.xlu0 %118
      %v120 = vrot.slane %v119, 4
      %v121 = vadd.f32 %v119, %v120
      %v122 = vrot.slane %v121, 2
      %v123 = vadd.f32 %v121, %v122
      %v124 = vrot.slane %v123, 1
      %v125 = vadd.f32 %v123, %v124
      %s126 = vtos %v125
      %v127 = vrcp.pop 2048.0
      %s128 = vtos %v127
      %s129 = smul.f32 %s126, %s128
      %s130 = scalar_lea.smem [#allocation8], 0
      %131 = sst [smem:[%s130]] %s129
    $region25: #{tpu_custom_call.1} parent=1 // pred_fallthru
      _
    // Predicated region
    $region26: #{tpu_custom_call.1} parent=1 // pred_check
      _
    $region27: #{tpu_custom_call.1} parent=1 // pred_check_branch
      %133 = sbr.rel (0) target = $region29
    $region28: #{tpu_custom_call.1} parent=1 // pred_region
      %s135 = ssub.s32 16, 16
      %136 = vsyncadd [#allocation5], %s135
      %139 = dma.smem_to_hbm [#allocation8], 16, %s2, [#allocation5]
    $region29: #{tpu_custom_call.1} parent=1 // pred_fallthru
      _
    // Predicated region
    $region30: #{tpu_custom_call.1} parent=1 // pred_check
      _
    $region31: #{tpu_custom_call.1} parent=1 // pred_check_branch
      %141 = sbr.rel (0) target = $region33
    $region32: #{tpu_custom_call.1} parent=1 // pred_region
      %142 = dma.done [#allocation5], 16
    $region33: #{tpu_custom_call.1} parent=1 // pred_fallthru
      _
    %143 = sfence
    %144 = vsyncpa [#allocation4], 1
    %145 = vsyncpa [#allocation7], 1
    %146 = vsyncpa [#allocation5], 1

</llo_original>
